<compile_context>
chip_gen: v6e
topology: v6e:2x2x1
jax: 0.10.0
libtpu: 0.0.40
codegen_flags: <defaults>
</compile_context>

<pallas_src>
import functools
import math

import numpy as np

import jax
import jax.numpy as jnp
from jax import lax
from jax.experimental import pallas as pl
from jax.experimental.pallas import tpu as pltpu


# Safe on every generation: v5e/v6e have 128 MiB physical VMEM, v7x has 64 MiB.
_VMEM_LIMIT_BYTES = 48 * 1024 * 1024
# ~8 MiB copy tiles: per-grid-step overhead (~0.35 us) becomes <5% of step time
# even at v7x's ~3.2 TB/s HBM bandwidth.
_TARGET_COPY_BLOCK_BYTES = 8 * 1024 * 1024


# ----------------------------------------------------------------------------
# Kernels
# ----------------------------------------------------------------------------
def _copy_kernel(x_ref, o_ref):
    # Identity weight => y = x.  Pure VMEM copy, HBM-roofline bound.
    o_ref[...] = x_ref[...]


def _matmul_kernel(x_ref, w_ref, o_ref):
    # General weight: y = x @ W.T, expressed as a dot_general that contracts
    # x's last axis with W's last axis -> no per-iteration transpose/XLU work.
    o_ref[...] = lax.dot_general(
        x_ref[...],
        w_ref[...],
        dimension_numbers=(((1,), (1,)), ((), ())),
        preferred_element_type=jnp.float32,
    ).astype(o_ref.dtype)


# ----------------------------------------------------------------------------
# Wrappers
# ----------------------------------------------------------------------------
def _pick_lane_dense_cols(n, last_dim):
    """Largest power-of-two multiple of 128 (<=1024) that divides n."""
    if n % 128 != 0:
        # Narrow fallback: masked stores are unavoidable for this size.
        return last_dim
    cols = 128
    while cols < 1024 and n % (cols * 2) == 0:
        cols *= 2
    return cols


@jax.jit
def _identity_copy(x):
    """Lane-dense tiled copy kernel: y = x (materialized output buffer)."""
    shape = x.shape
    n = math.prod(shape)
    cols = _pick_lane_dense_cols(n, shape[-1])
    rows = n // cols
    x2d = x.reshape(rows, cols)

    itemsize = x.dtype.itemsize
    block_rows = max(8, (_TARGET_COPY_BLOCK_BYTES // (cols * itemsize)) // 8 * 8)
    if block_rows >= rows:
        if rows >= 16:
            # Split into >=2 blocks so the parallel axis can be sharded across
            # v7x's two TensorCores and inbound/outbound DMA can overlap.
            block_rows = max(8, ((rows // 2 + 7) // 8) * 8)
        else:
            block_rows = rows  # single block equal to the full array

    grid = (pl.cdiv(rows, block_rows),)
    out = pl.pallas_call(
        _copy_kernel,
        out_shape=jax.ShapeDtypeStruct((rows, cols), x.dtype),
        grid=grid,
        in_specs=[pl.BlockSpec((block_rows, cols), lambda i: (i, 0))],
        out_specs=pl.BlockSpec((block_rows, cols), lambda i: (i, 0)),
        compiler_params=pltpu.CompilerParams(
            dimension_semantics=("parallel",),
            vmem_limit_bytes=_VMEM_LIMIT_BYTES,
        ),
    )(x2d)
    return out.reshape(shape)


@functools.partial(jax.jit, static_argnames=("perm",))
def _permutation_gather(x, perm):
    """Permutation weight: y[..., j] = x[..., perm[j]] -- a lane gather."""
    idx = jnp.asarray(perm, dtype=jnp.int32)
    return jnp.take(x, idx, axis=-1)


@functools.partial(jax.jit, static_argnames=("tm", "tn"))
def _general_matmul(x, weight, *, tm=512, tn=512):
    """General path: y = x @ weight.T for an arbitrary [dim, dim] weight."""
    dim = x.shape[-1]
    lead = x.shape[:-1]
    m = math.prod(lead) if lead else 1
    x2d = x.reshape(m, dim)
    w = weight.astype(x.dtype)

    block_m = m if m <= tm else tm          # tm multiple of 8; ragged masked
    block_n = dim if dim <= tn else tn      # tn multiple of 128; ragged masked
    grid = (pl.cdiv(m, block_m), pl.cdiv(dim, block_n))

    out2d = pl.pallas_call(
        _matmul_kernel,
        out_shape=jax.ShapeDtypeStruct((m, dim), x.dtype),
        grid=grid,
        in_specs=[
            pl.BlockSpec((block_m, dim), lambda i, j: (i, 0)),
            pl.BlockSpec((block_n, dim), lambda i, j: (j, 0)),
        ],
        out_specs=pl.BlockSpec((block_m, block_n), lambda i, j: (i, j)),
        compiler_params=pltpu.CompilerParams(
            dimension_semantics=("parallel", "parallel"),
            vmem_limit_bytes=_VMEM_LIMIT_BYTES,
        ),
    )(x2d, w)
    return out2d.reshape(*lead, dim)


def _classify_weight(weight):
    """Host-side classification of the frozen Shortcut weight."""
    try:
        w = np.asarray(jax.device_get(weight))
    except Exception:
        # Abstract tracer: cannot inspect values; use the general MXU kernel.
        return "general", None
    dim = w.shape[-1]
    if w.shape != (dim, dim):
        return "general", None
    if np.array_equal(w, np.eye(dim, dtype=w.dtype)):
        return "identity", None
    is_binary = np.all((w == 0) | (w == 1))
    if is_binary and np.all(w.sum(axis=0) == 1) and np.all(w.sum(axis=1) == 1):
        # Permutation matrix: y[..., j] = x[..., argmax_k W[j, k]].
        return "permutation", tuple(int(i) for i in np.argmax(w, axis=1))
    return "general", None


def shortcut_forward(x, weight, *, materialize_identity=False):
    """Shortcut.forward: y = x @ weight.T for x of shape [..., dim].

    The weight is classified on the host:
      * identity    -> return x (zero HBM traffic); optional materialized copy
      * permutation -> static lane gather (same cost as the identity copy)
      * general     -> tiled MXU matmul kernel
    """
    kind, perm = _classify_weight(weight)
    if kind == "identity":
        if materialize_identity:
            return _identity_copy(x)
        return x
    if kind == "permutation":
        return _permutation_gather(x, perm)
    return _general_matmul(x, weight)


# ----------------------------------------------------------------------------
# Demo / self-test
# ----------------------------------------------------------------------------
if __name__ == "__main__":
    dim = 32
    batch, seq = 2, 8

    # Deterministic parameter init per Shortcut.__init__: identity = eye(dim).
    identity = jnp.eye(dim, dtype=jnp.float32)

    key = jax.random.PRNGKey(0)
    kx, kw = jax.random.split(key)
    x = jax.random.normal(kx, (batch, seq, dim), dtype=jnp.float32)

    # 1) Module-default frozen identity: zero-copy fast path.
    y_id = shortcut_forward(x, identity)
    jax.block_until_ready(y_id)
    assert y_id.shape == x.shape and y_id.dtype == x.dtype
    assert jnp.allclose(y_id, x @ identity.T, atol=1e-6), "identity path mismatch"

    # 1b) Materialized identity: lane-dense Pallas copy kernel.
    y_copy = shortcut_forward(x, identity, materialize_identity=True)
    jax.block_until_ready(y_copy)
    assert y_copy.shape == x.shape and y_copy.dtype == x.dtype
    assert jnp.array_equal(y_copy, x), "materialized copy mismatch"

    # 2) Permutation weight (the documented replacement for eye): lane gather.
    perm = jax.random.permutation(jax.random.PRNGKey(1), dim)
    w_perm = jnp.eye(dim, dtype=jnp.float32)[perm]
    y_perm = shortcut_forward(x, w_perm)
    jax.block_until_ready(y_perm)
    assert jnp.allclose(y_perm, x @ w_perm.T, atol=1e-6), "permutation path mismatch"

    # 3) Arbitrary dense weight: Pallas MXU matmul kernel.
    w_dense = jax.random.normal(kw, (dim, dim), dtype=jnp.float32)
    y_dense = shortcut_forward(x, w_dense)
    jax.block_until_ready(y_dense)
    ref_dense = np.asarray(x) @ np.asarray(w_dense).T
    assert y_dense.shape == x.shape and y_dense.dtype == x.dtype
    assert np.allclose(np.asarray(y_dense), ref_dense, atol=1e-3, rtol=1e-3), \
        "general matmul path mismatch"

    print("KERNEL_OK")
</pallas_src>

<mosaic_0001>
module attributes {stable_mosaic.version = 11 : i64} {
  func.func @_copy_kernel(%arg0: i32, %arg1: memref<1x512xf32, #tpu.memory_space<vmem>>, %arg2: memref<1x512xf32, #tpu.memory_space<vmem>>) attributes {dimension_semantics = [#tpu.dimension_semantics<parallel>], iteration_bounds = array<i64: 1>, scalar_prefetch = 0 : i64, scratch_operands = 0 : i64, tpu.core_type = #tpu.core_type<tc>, window_params = [{transform_indices = @transform_0, window_bounds = array<i64: 1, 512>}, {transform_indices = @transform_1, window_bounds = array<i64: 1, 512>}]} {
    %c0 = arith.constant 0 : index
    %c0_0 = arith.constant 0 : index
    %0 = vector.load %arg1[%c0, %c0_0] : memref<1x512xf32, #tpu.memory_space<vmem>>, vector<1x512xf32>
    %c0_1 = arith.constant 0 : index
    %c0_2 = arith.constant 0 : index
    %1 = vector.load %arg2[%c0_1, %c0_2] : memref<1x512xf32, #tpu.memory_space<vmem>>, vector<1x512xf32>
    tpu.vector_store %arg2[%c0_1, %c0_2], %0 {strides = array<i32>} : memref<1x512xf32, #tpu.memory_space<vmem>>, vector<1x512xf32>,
    return
  }
  func.func @transform_0(%arg0: i32) -> (i32, i32) {
    %c0_i32 = arith.constant 0 : i32
    %c0_i32_0 = arith.constant 0 : i32
    return %arg0, %c0_i32 : i32, i32
  }
  func.func @transform_1(%arg0: i32) -> (i32, i32) {
    %c0_i32 = arith.constant 0 : i32
    %c0_i32_0 = arith.constant 0 : i32
    return %arg0, %c0_i32 : i32, i32
  }
}

</mosaic_0001>

<llo_original>
// kernel: _identity_copy.1
$region0: #{_identity_copy.1}
  #allocation0 [shape = 'u32[]', space=smem, size = 0x4, offset = 0x4, fixed_abs, tag = 'smem constant byte address 0x4 - core index']
  #allocation1 [shape = 'u32[144,128]{1,0:T(1,128)}', space=vmem, size = 0x12000, scoped, tag = 'internal scratch']
  %s0 = inlined_call_operand.vmem [shape: f32[1,512], index: 0, kind: input, shape index: {}]
  %s1 = inlined_call_operand.vmem [shape: f32[1,512], index: 1, kind: output, shape index: {}]
  %s2 = sld [smem:[#allocation0]]
  $region14: #{_identity_copy.1} parent=0
    _
  %s4 = ssub.s32 1, %s2
  %s5 = scalar_select 0, %s4, %s2
  // Predicated region
  $region2: #{_identity_copy.1} parent=0 // pred_check
    _
  $region3: #{_identity_copy.1} parent=0 // pred_check_branch
    %7 = sbr.rel (0) target = $region5
  $region4: #{_identity_copy.1} parent=0 // pred_region
    _
  $region5: #{_identity_copy.1} parent=0 // pred_fallthru
    _
  %v8 = vld [vmem:[%s0] sm:$0xf]
  %v9 = vlaneseq
  %vm10 = vcmp.ge.s32.totalorder %v9, 0
  %vm11 = vcmp.lt.s32.totalorder %v9, 512
  %vm12 = vmand %vm10, %vm11
  %13 = vst.msk [vmem:[%s1] sm:$0xf] %vm12, %v8
  // Predicated region
  $region6: #{_identity_copy.1} parent=0 // pred_check
    _
  $region7: #{_identity_copy.1} parent=0 // pred_check_branch
    %15 = sbr.rel (0) target = $region9
  $region8: #{_identity_copy.1} parent=0 // pred_region
    _
  $region9: #{_identity_copy.1} parent=0 // pred_fallthru
    _
  // Predicated region
  $region10: #{_identity_copy.1} parent=0 // pred_check
    _
  $region11: #{_identity_copy.1} parent=0 // pred_check_branch
    %17 = sbr.rel (0) target = $region13
  $region12: #{_identity_copy.1} parent=0 // pred_region
    _
  $region13: #{_identity_copy.1} parent=0 // pred_fallthru
    _

</llo_original>
